<compile_context>
chip_gen: v5e
topology: v5e:2x2
jax: 0.10.0
libtpu: 0.0.40
codegen_flags: <defaults>
</compile_context>

<pallas_src>
import jax
import jax.numpy as jnp
from jax.experimental import pallas as pl
from jax.experimental.pallas import tpu as pltpu

HIDDEN_SIZE = 16
OUTPUT_SIZE = 2
LANES = 128          # lane-dense padded output width (slice back to 2 in wrapper)


def mlp_kernel(x_ref, w_ref, b_ref, o_ref):
    """Collapsed affine map + stable softmax.

    x_ref: (TB, F)      streamed batch tile
    w_ref: (F, LANES)   collapsed weight, zero-padded past OUTPUT_SIZE (resident)
    b_ref: (1, LANES)   collapsed bias, -1e30 past OUTPUT_SIZE (resident)
    o_ref: (TB, LANES)  lane-dense padded probabilities
    """
    z = jnp.dot(x_ref[...], w_ref[...], preferred_element_type=jnp.float32)
    z = z + b_ref[...]                                    # (TB, LANES), VPU add

    # Stable softmax over the lane axis; padded lanes (-1e30) contribute exp->0.
    m = jnp.max(z, axis=1, keepdims=True)                 # XLU reduce
    e = jnp.exp(z - m)                                    # EUP
    denom = jnp.sum(e, axis=1, keepdims=True)
    # exact reciprocal (approx=True would risk the 1e-5 tolerance)
    o_ref[...] = (e * pl.reciprocal(denom, approx=False)).astype(o_ref.dtype)


def _round_up(n, m):
    return ((n + m - 1) // m) * m


def neural_network_forward(x, params, *, block_rows=2048):
    """x: (B, input_size) float32. params: dict of weights/biases/k."""
    B, F = x.shape
    w1, b1 = params["w1"], params["b1"]
    w2, b2 = params["w2"], params["b2"]
    w3, b3 = params["w3"], params["b3"]
    k1, k2 = params["k"][0], params["k"][1]

    # ---- Algebraic collapse (exact for fixed params) ------------------------
    #   a1 = k1*(x@W1 + b1) + k2
    #   a2 = k1*(a1@W2 + b2) + k2
    #   z3 = a2@W3 + b3  =  x @ W_eff + b_eff
    w_eff = (k1 * k1) * (w1 @ w2 @ w3)                                   # (F, OUT)
    b_eff = (k1 * ((k1 * b1 + k2) @ w2 + b2) + k2) @ w3 + b3             # (1, OUT)

    # ---- Lane-dense padding of the narrow output axis ------------------------
    out_dim = w3.shape[1]
    w_pad = jnp.zeros((F, LANES), jnp.float32).at[:, :out_dim].set(w_eff)
    b_pad = jnp.full((1, LANES), -1e30, jnp.float32).at[:, :out_dim].set(b_eff)

    # ---- Batch tiling: sublane-aligned tile, big as is useful ---------------
    TB = min(block_rows, _round_up(B, 8))      # multiple of 8 sublanes
    n_blocks = pl.cdiv(B, TB)
    B_pad = n_blocks * TB
    if B_pad != B:
        x = jnp.pad(x, ((0, B_pad - B), (0, 0)))

    cost = pl.CostEstimate(
        flops=2 * B_pad * F * LANES,
        transcendentals=B_pad * LANES,
        bytes_accessed=4 * (B_pad * F + F * LANES + LANES + B_pad * LANES),
    )

    out = pl.pallas_call(
        mlp_kernel,
        out_shape=jax.ShapeDtypeStruct((B_pad, LANES), jnp.float32),
        grid_spec=pltpu.PrefetchScalarGridSpec(
            num_scalar_prefetch=0,
            grid=(n_blocks,),
            in_specs=[
                pl.BlockSpec((TB, F), lambda i: (i, 0)),        # streamed x tile
                pl.BlockSpec((F, LANES), lambda i: (0, 0)),     # resident weight
                pl.BlockSpec((1, LANES), lambda i: (0, 0)),     # resident bias
            ],
            out_specs=pl.BlockSpec((TB, LANES), lambda i: (i, 0)),
        ),
        compiler_params=pltpu.CompilerParams(
            dimension_semantics=("parallel",),
        ),
        cost_estimate=cost,
    )(x, w_pad, b_pad)

    return out[:B, :out_dim]


def init_params(key, input_size, hidden_size, output_size):
    """Deterministic init mimicking nn.Linear default (uniform +/- 1/sqrt(fan_in))."""
    ks = jax.random.split(key, 6)

    def linear(kw, kb, fan_in, fan_out):
        bound = 1.0 / jnp.sqrt(fan_in)
        w = jax.random.uniform(kw, (fan_in, fan_out), jnp.float32, -bound, bound)
        b = jax.random.uniform(kb, (1, fan_out), jnp.float32, -bound, bound)
        return w, b

    w1, b1 = linear(ks[0], ks[1], input_size, hidden_size)
    w2, b2 = linear(ks[2], ks[3], hidden_size, hidden_size)
    w3, b3 = linear(ks[4], ks[5], hidden_size, output_size)
    # CustomActivation parameters: k1=1.0, k2=0.0 (as in __init__)
    k = jnp.array([1.0, 0.0], dtype=jnp.float32)
    return {"w1": w1, "b1": b1, "w2": w2, "b2": b2, "w3": w3, "b3": b3, "k": k}


def reference_forward(x, p):
    """Pure-JAX reference following the original per-layer formula."""
    k1, k2 = p["k"][0], p["k"][1]
    z1 = x @ p["w1"] + p["b1"]
    a1 = k1 * z1 + k2
    z2 = a1 @ p["w2"] + p["b2"]
    a2 = k1 * z2 + k2
    z3 = a2 @ p["w3"] + p["b3"]
    return jax.nn.softmax(z3, axis=1)


if __name__ == "__main__":
    key = jax.random.PRNGKey(0)
    kx, kp = jax.random.split(key)

    batch = 8
    input_size = 8  # X_train.shape[1] in the original script; small example value

    x = jax.random.normal(kx, (batch, input_size), dtype=jnp.float32)
    params = init_params(kp, input_size, HIDDEN_SIZE, OUTPUT_SIZE)

    out = neural_network_forward(x, params)
    out = jax.block_until_ready(out)

    ref = reference_forward(x, params)
    assert out.shape == (batch, OUTPUT_SIZE)
    assert jnp.allclose(out, ref, atol=1e-5, rtol=1e-5)
    assert jnp.allclose(jnp.sum(out, axis=1), 1.0, atol=1e-5)

    print("KERNEL_OK")
</pallas_src>

<mosaic_0001>
module attributes {stable_mosaic.version = 11 : i64} {
  func.func @mlp_kernel(%arg0: i32, %arg1: memref<8x8xf32, #tpu.memory_space<vmem>>, %arg2: memref<8x128xf32, #tpu.memory_space<vmem>>, %arg3: memref<1x128xf32, #tpu.memory_space<vmem>>, %arg4: memref<8x128xf32, #tpu.memory_space<vmem>>) attributes {dimension_semantics = [#tpu.dimension_semantics<parallel>], iteration_bounds = array<i64: 1>, scalar_prefetch = 0 : i64, scratch_operands = 0 : i64, tpu.core_type = #tpu.core_type<tc>, window_params = [{transform_indices = @transform_0, window_bounds = array<i64: 8, 8>}, {pipeline_mode = #tpu.pipeline_mode<synchronous>, transform_indices = @transform_1, window_bounds = array<i64: 8, 128>}, {pipeline_mode = #tpu.pipeline_mode<synchronous>, transform_indices = @transform_2, window_bounds = array<i64: 1, 128>}, {transform_indices = @transform_3, window_bounds = array<i64: 8, 128>}]} {
    %c0 = arith.constant 0 : index
    %c0_0 = arith.constant 0 : index
    %0 = vector.load %arg1[%c0, %c0_0] : memref<8x8xf32, #tpu.memory_space<vmem>>, vector<8x8xf32>
    %c0_1 = arith.constant 0 : index
    %c0_2 = arith.constant 0 : index
    %1 = vector.load %arg2[%c0_1, %c0_2] : memref<8x128xf32, #tpu.memory_space<vmem>>, vector<8x128xf32>
    %cst = arith.constant dense<0.000000e+00> : vector<8x128xf32>
    %2 = tpu.matmul %0, %1, %cst {dimension_numbers = #tpu.dot_dimension_numbers<[1], [0], [0], [1], [0, 0, 1, 1], [], []>} : vector<8x8xf32>, vector<8x128xf32>, vector<8x128xf32> -> vector<8x128xf32>
    %c0_3 = arith.constant 0 : index
    %c0_4 = arith.constant 0 : index
    %3 = vector.load %arg3[%c0_3, %c0_4] : memref<1x128xf32, #tpu.memory_space<vmem>>, vector<1x128xf32>
    %4 = vector.broadcast %3 : vector<1x128xf32> to vector<8x128xf32>
    %5 = arith.addf %2, %4 : vector<8x128xf32>
    %cst_5 = arith.constant dense<0xFF800000> : vector<8xf32>
    %6 = vector.multi_reduction <maximumf>, %5, %cst_5 [1] : vector<8x128xf32> to vector<8xf32>
    %7 = vector.shape_cast %6 : vector<8xf32> to vector<8x1xf32>
    %8 = vector.broadcast %7 : vector<8x1xf32> to vector<8x128xf32>
    %9 = arith.subf %5, %8 : vector<8x128xf32>
    %10 = math.exp %9 : vector<8x128xf32>
    %cst_6 = arith.constant dense<0.000000e+00> : vector<8xf32>
    %11 = vector.multi_reduction <add>, %10, %cst_6 [1] : vector<8x128xf32> to vector<8xf32>
    %12 = vector.shape_cast %11 : vector<8xf32> to vector<8x1xf32>
    %13 = tpu.reciprocal %12 : vector<8x1xf32> -> vector<8x1xf32>
    %14 = vector.broadcast %13 : vector<8x1xf32> to vector<8x128xf32>
    %15 = arith.mulf %10, %14 : vector<8x128xf32>
    %c0_7 = arith.constant 0 : index
    %c0_8 = arith.constant 0 : index
    %16 = vector.load %arg4[%c0_7, %c0_8] : memref<8x128xf32, #tpu.memory_space<vmem>>, vector<8x128xf32>
    tpu.vector_store %arg4[%c0_7, %c0_8], %15 {strides = array<i32>} : memref<8x128xf32, #tpu.memory_space<vmem>>, vector<8x128xf32>,
    return
  }
  func.func @transform_0(%arg0: i32) -> (i32, i32) {
    %c0_i32 = arith.constant 0 : i32
    %c0_i32_0 = arith.constant 0 : i32
    return %arg0, %c0_i32 : i32, i32
  }
  func.func @transform_1(%arg0: i32) -> (i32, i32) {
    %c0_i32 = arith.constant 0 : i32
    %c0_i32_0 = arith.constant 0 : i32
    %c0_i32_1 = arith.constant 0 : i32
    return %c0_i32, %c0_i32_0 : i32, i32
  }
  func.func @transform_2(%arg0: i32) -> (i32, i32) {
    %c0_i32 = arith.constant 0 : i32
    %c0_i32_0 = arith.constant 0 : i32
    %c0_i32_1 = arith.constant 0 : i32
    return %c0_i32, %c0_i32_0 : i32, i32
  }
  func.func @transform_3(%arg0: i32) -> (i32, i32) {
    %c0_i32 = arith.constant 0 : i32
    %c0_i32_0 = arith.constant 0 : i32
    return %arg0, %c0_i32 : i32, i32
  }
}

</mosaic_0001>

<llo_original>
// kernel: tpu_custom_call.1
$region0: #{tpu_custom_call.1}
  #allocation0 [shape = 'u32[]', space=smem, size = 0x4, offset = 0x4, fixed_abs, tag = 'smem constant byte address 0x4 - core index']
  #allocation1 [shape = 'u32[72,128]{1,0:T(1,128)}', space=vmem, size = 0x9000, scoped, tag = 'internal scratch']
  %s0 = inlined_call_operand.hbm [shape: f32[8,8], index: 0, kind: input, shape index: {}]
  %s1 = inlined_call_operand.hbm [shape: f32[8,128], index: 1, kind: input, shape index: {}]
  %s2 = inlined_call_operand.vmem [shape: f32[1,128], index: 2, kind: input, shape index: {}]
  %s3 = inlined_call_operand.hbm [shape: f32[8,128], index: 3, kind: output, shape index: {}]
  %s4 = sld [smem:[#allocation0]]
  $region30: #{tpu_custom_call.1} parent=0
    _
  %s6 = ssub.s32 1, %s4
  %s7 = scalar_select 0, %s6, %s4
  $region1: #{tpu_custom_call.1} parent=0
    #allocation2 [shape = 'u8[4096]{0}', space=vmem, size = 0x1000, scoped, tag = 'input window, operand 0, single buffered']
    #allocation3 [shape = 's32[1]{0}', space=sflag, size = 0x4, scoped, tag = 'scoped memory for tpu_custom_call.1']
    #allocation4 [shape = 's32[1]{0}', space=sflag, size = 0x4, scoped, tag = 'scoped memory for tpu_custom_call.1']
    #allocation5 [shape = 'u8[4096]{0}', space=vmem, size = 0x1000, scoped, tag = 'input window, operand 1, single buffered']
    #allocation6 [shape = 's32[1]{0}', space=sflag, size = 0x4, scoped, tag = 'scoped memory for tpu_custom_call.1']
    #allocation7 [shape = 'u8[4096]{0}', space=vmem, size = 0x1000, scoped, tag = 'output window, operand 0, single buffered']
    %8 = vsyncpa [#allocation3], 0
    %9 = vsyncpa [#allocation6], 0
    %10 = vsyncpa [#allocation4], 0
    // Predicated region
    $region2: #{tpu_custom_call.1} parent=1 // pred_check
      _
    $region3: #{tpu_custom_call.1} parent=1 // pred_check_branch
      %12 = sbr.rel (0) target = $region5
    $region4: #{tpu_custom_call.1} parent=1 // pred_region
      %14 = vsyncadd [#allocation3], 0
      %s16 = sshll.u32 %s0, 4
      %s17 = int_to_ptr.hbm [resolvable:$true] %s16
      %s18 = sshll.u32 [#allocation2], 4
      %s19 = int_to_ptr.vmem [resolvable:$true] %s18
      %21 = dma.hbm_to_vmem [thread:$0]  %s17, 128, %s19, [#allocation3]
    $region5: #{tpu_custom_call.1} parent=1 // pred_fallthru
      _
    // Predicated region
    $region6: #{tpu_custom_call.1} parent=1 // pred_check
      _
    $region7: #{tpu_custom_call.1} parent=1 // pred_check_branch
      %23 = sbr.rel (0) target = $region9
    $region8: #{tpu_custom_call.1} parent=1 // pred_region
      %25 = vsyncadd [#allocation6], 0
      %s27 = sshll.u32 %s1, 4
      %s28 = int_to_ptr.hbm [resolvable:$true] %s27
      %s29 = sshll.u32 [#allocation5], 4
      %s30 = int_to_ptr.vmem [resolvable:$true] %s29
      %32 = dma.hbm_to_vmem [thread:$0]  %s28, 128, %s30, [#allocation6]
    $region9: #{tpu_custom_call.1} parent=1 // pred_fallthru
      _
    // Predicated region
    $region10: #{tpu_custom_call.1} parent=1 // pred_check
      _
    $region11: #{tpu_custom_call.1} parent=1 // pred_check_branch
      %34 = sbr.rel (0) target = $region13
    $region12: #{tpu_custom_call.1} parent=1 // pred_region
      _
    $region13: #{tpu_custom_call.1} parent=1 // pred_fallthru
      _
    // Predicated region
    $region14: #{tpu_custom_call.1} parent=1 // pred_check
      _
    $region15: #{tpu_custom_call.1} parent=1 // pred_check_branch
      %36 = sbr.rel (0) target = $region17
    $region16: #{tpu_custom_call.1} parent=1 // pred_region
      %38 = dma.done [#allocation3], 128
    $region17: #{tpu_custom_call.1} parent=1 // pred_fallthru
      _
    // Predicated region
    $region18: #{tpu_custom_call.1} parent=1 // pred_check
      _
    $region19: #{tpu_custom_call.1} parent=1 // pred_check_branch
      %40 = sbr.rel (0) target = $region21
    $region20: #{tpu_custom_call.1} parent=1 // pred_region
      %42 = dma.done [#allocation6], 128
    $region21: #{tpu_custom_call.1} parent=1 // pred_fallthru
      _
    %v43 = vld [vmem:[#allocation2] sm:$0xff]
    %v44 = vld [vmem:[#allocation5] sm:$0xff]
    %v45 = vld [vmem:[%s2] sm:$0x1]
    %v47 = vperm.slane %v45, 0
    %vm49 = vcmask 64512
    %v51 = vsel %vm49, %v43, 0
    %53 = vmatpush.msra.mxu0 0.0
    %54 = vmatpush.msra.mxu0 0.0
    %55 = vmatpush.msra.mxu0 0.0
    %56 = vmatpush.msra.mxu0 0.0
    %57 = vmatpush.msra.mxu0 0.0
    %58 = vmatpush.msra.mxu0 0.0
    %59 = vmatpush.msra.mxu0 0.0
    %60 = vmatpush.msra.mxu0 0.0
    %61 = vmatpush.msra.mxu0 0.0
    %62 = vmatpush.msra.mxu0 0.0
    %63 = vmatpush.msra.mxu0 0.0
    %64 = vmatpush.msra.mxu0 0.0
    %65 = vmatpush.msra.mxu0 0.0
    %66 = vmatpush.msra.mxu0 0.0
    %67 = vmatpush.msra.mxu0 0.0
    %68 = vmatpush.msra.mxu0 %v44
    %69 = vmatmul.f32.gmra.mxu0 %v51
    %v70 = vpop.f32.mrf.mxu0
    %v71 = vadd.f32 %v47, %v70
    %72 = vdwg.mxu0
    %73 = vmax.xlane.f32.xlu0 %v71
    %v74 = vpop.xlane.xlu0 %73
    %v75 = vsub.f32 %v71, %v74
    %v76 = vmul.f32 %v75, 1.442695
    %v77 = vpow.pop %v76
    %78 = vadd.xlane.f32.xlu0 %v77
    %v79 = vpop.xlane.xlu0 %78
    %v80 = vrcp.pop %v79
    %v81 = vmul.f32 %v79, %v80
    %v82 = vsub.f32 1.0, %v81
    %v83 = vmul.f32 %v80, %v82
    %v84 = vadd.f32 %v80, %v83
    %vm85 = vweird.f32 %v79
    %vm86 = vweird.f32 %v80
    %vm87 = vmor %vm85, %vm86
    %v88 = vsel %vm87, %v80, %v84
    %v89 = vand.u32 2147483647, %v79
    %vm90 = vcmp.eq.f32.partialorder %v89, 8.507059e+37
    %v91 = vand.u32 %v79, 2147483648
    %v92 = vor.u32 1.1754944e-38, %v91
    %v93 = vsel %vm90, %v92, %v88
    %v94 = vmul.f32 %v77, %v93
    %95 = vst [vmem:[#allocation7] sm:$0xff] %v94
    // Predicated region
    $region22: #{tpu_custom_call.1} parent=1 // pred_check
      _
    $region23: #{tpu_custom_call.1} parent=1 // pred_check_branch
      %97 = sbr.rel (0) target = $region25
    $region24: #{tpu_custom_call.1} parent=1 // pred_region
      %99 = vsyncadd [#allocation4], 0
      %s101 = sshll.u32 [#allocation7], 4
      %s102 = int_to_ptr.vmem [resolvable:$true] %s101
      %s103 = sshll.u32 %s3, 4
      %s104 = int_to_ptr.hbm [resolvable:$true] %s103
      %106 = dma.vmem_to_hbm [thread:$0]  %s102, 128, %s104, [#allocation4]
    $region25: #{tpu_custom_call.1} parent=1 // pred_fallthru
      _
    // Predicated region
    $region26: #{tpu_custom_call.1} parent=1 // pred_check
      _
    $region27: #{tpu_custom_call.1} parent=1 // pred_check_branch
      %108 = sbr.rel (0) target = $region29
    $region28: #{tpu_custom_call.1} parent=1 // pred_region
      %110 = dma.done [#allocation4], 128
    $region29: #{tpu_custom_call.1} parent=1 // pred_fallthru
      _
    %111 = vsyncpa [#allocation3], 1
    %112 = vsyncpa [#allocation6], 1
    %113 = vsyncpa [#allocation4], 1

</llo_original>
